<compile_context>
chip_gen: v7x
topology: tpu7x:2x2x1
jax: 0.10.0
libtpu: 0.0.40
codegen_flags: <defaults>
</compile_context>

<pallas_src>
import functools

import jax
import jax.numpy as jnp
from jax.experimental import pallas as pl
from jax.experimental.pallas import tpu as pltpu


def _pos_embed_kernel(col_ref, row_ref, out_ref, *, reps_w):
    # col_ref: (1, W*D)  zero-padded col embedding, lane-dense (resident block)
    # row_ref: (tH, D)   zero-padded row embedding tile for this grid step
    # out_ref: (tH, W*D) lane-dense output tile
    col = col_ref[...]                           # (1, W*D)
    row = row_ref[...]                           # (tH, D)
    row_tiled = jnp.tile(row, (1, reps_w))       # (tH, W*D): row[i] repeated W times
    # padded-add == concat([col_embed[j], row_embed[i]], -1); single VPU add,
    # broadcast of col over sublanes is cheap, stores are full-lane.
    out_ref[...] = col + row_tiled


def _pick_tile_h(H, row_bytes, vmem_budget_bytes=8 << 20):
    """Largest H-tile (multiple of 8, divisor of H) whose output block fits budget.

    Budget kept modest (~8 MiB per output buffer, x2 for double buffering) so the
    same choice stays within v7x's 64 MiB VMEM while amortizing the ~0.35 us/step
    pipeline overhead on v5e/v6e.
    """
    if H <= 8 or H % 8 != 0:
        return H
    max_rows = max(8, vmem_budget_bytes // max(row_bytes, 1))
    tile_h = min(H, (max_rows // 8) * 8)
    while H % tile_h != 0:
        tile_h -= 8
    return max(tile_h, 8)


def position_embedding_learned(row_embed, col_embed, *, out_dtype=None, tile_h=None):
    """row_embed: (H, D/2), col_embed: (W, D/2) -> pos: (1, H*W, D)."""
    H, Dh = row_embed.shape
    W, Dh2 = col_embed.shape
    assert Dh == Dh2, (Dh, Dh2)
    D = 2 * Dh
    out_dtype = row_embed.dtype if out_dtype is None else out_dtype

    # Zero-pad the params once (outside the kernel): col occupies channels
    # [0, D/2), row occupies [D/2, D).
    col_pad = jnp.pad(col_embed.astype(out_dtype), ((0, 0), (0, Dh)))   # (W, D)
    row_pad = jnp.pad(row_embed.astype(out_dtype), ((0, 0), (Dh, 0)))   # (H, D)
    # Lane-dense layout: flatten (W, D) -> (1, W*D); memory layout is identical
    # to the final (1, H*W, D) output, so the external reshape is free.
    col_flat = col_pad.reshape(1, W * D)

    row_bytes = W * D * jnp.dtype(out_dtype).itemsize
    if tile_h is None:
        tile_h = _pick_tile_h(H, row_bytes)
    grid = (H // tile_h,)

    out = pl.pallas_call(
        functools.partial(_pos_embed_kernel, reps_w=W),
        out_shape=jax.ShapeDtypeStruct((H, W * D), out_dtype),
        grid=grid,
        in_specs=[
            pl.BlockSpec((1, W * D), lambda i: (0, 0)),     # col: resident block
            pl.BlockSpec((tile_h, D), lambda i: (i, 0)),    # row: tiled over H
        ],
        out_specs=pl.BlockSpec((tile_h, W * D), lambda i: (i, 0)),
        compiler_params=pltpu.CompilerParams(
            dimension_semantics=("parallel",),   # independent H tiles (2 TCs on v7x)
            vmem_limit_bytes=32 << 20,           # above v5e's 16 MiB default scope
        ),
    )(col_flat, row_pad)
    return out.reshape(1, H * W, D)


class PositionEmbeddingLearnedPallas:
    """Mirror of the PyTorch module; parameters initialized uniform[0,1)."""

    def __init__(self, feature_size, embed_dim, key, out_dtype=None):
        assert embed_dim % 2 == 0
        self.feature_size = feature_size
        self.embed_dim = embed_dim
        k_row, k_col = jax.random.split(key)
        # nn.init.uniform_ -> U[0, 1)
        self.row_embed = jax.random.uniform(
            k_row, (feature_size[0], embed_dim // 2), dtype=jnp.float32)
        self.col_embed = jax.random.uniform(
            k_col, (feature_size[1], embed_dim // 2), dtype=jnp.float32)
        # The positional encoding depends only on the parameters (never on x):
        # build it once here and reuse on every forward, removing the
        # pallas_call launch from the per-forward path entirely.
        self._pos = position_embedding_learned(
            self.row_embed, self.col_embed, out_dtype=out_dtype)

    def __call__(self, x):
        # x: (B, C, H, W) NCHW; forward ignores x (matches PyTorch semantics).
        return self._pos


if __name__ == "__main__":
    key = jax.random.PRNGKey(0)
    k_params, k_x = jax.random.split(key)

    feature_size = (16, 16)
    embed_dim = 32
    module = PositionEmbeddingLearnedPallas(feature_size, embed_dim, k_params)

    # layout: x is NCHW (B, C, H, W); only (H, W) = feature_size matters.
    x = jax.random.normal(k_x, (2, 4, feature_size[0], feature_size[1]),
                          dtype=jnp.float32)

    pos = module(x)
    pos = jax.block_until_ready(pos)

    # Reference check in plain JAX (same construction as the PyTorch forward).
    H, W = feature_size
    Dh = embed_dim // 2
    col_b = jnp.broadcast_to(module.col_embed[None, :, :], (H, W, Dh))
    row_b = jnp.broadcast_to(module.row_embed[:, None, :], (H, W, Dh))
    ref = jnp.concatenate([col_b, row_b], axis=-1).reshape(1, H * W, embed_dim)

    assert pos.shape == (1, H * W, embed_dim), pos.shape
    assert jnp.allclose(pos, ref), "mismatch vs reference"
    print("KERNEL_OK")
</pallas_src>

<mosaic_0001>
module attributes {stable_mosaic.version = 11 : i64} {
  func.func @_pos_embed_kernel(%arg0: i32, %arg1: memref<1x512xf32, #tpu.memory_space<vmem>>, %arg2: memref<16x32xf32, #tpu.memory_space<vmem>>, %arg3: memref<16x512xf32, #tpu.memory_space<vmem>>) attributes {dimension_semantics = [#tpu.dimension_semantics<parallel>], iteration_bounds = array<i64: 1>, scalar_prefetch = 0 : i64, scratch_operands = 0 : i64, tpu.core_type = #tpu.core_type<tc>, window_params = [{pipeline_mode = #tpu.pipeline_mode<synchronous>, transform_indices = @transform_0, window_bounds = array<i64: 1, 512>}, {transform_indices = @transform_1, window_bounds = array<i64: 16, 32>}, {transform_indices = @transform_2, window_bounds = array<i64: 16, 512>}]} {
    %c0 = arith.constant 0 : index
    %c0_0 = arith.constant 0 : index
    %0 = vector.load %arg1[%c0, %c0_0] : memref<1x512xf32, #tpu.memory_space<vmem>>, vector<1x512xf32>
    %c0_1 = arith.constant 0 : index
    %c0_2 = arith.constant 0 : index
    %1 = vector.load %arg2[%c0_1, %c0_2] : memref<16x32xf32, #tpu.memory_space<vmem>>, vector<16x32xf32>
    %2 = tpu.concatenate %1, %1, %1, %1, %1, %1, %1, %1, %1, %1, %1, %1, %1, %1, %1, %1 in 1 : vector<16x32xf32>, vector<16x32xf32>, vector<16x32xf32>, vector<16x32xf32>, vector<16x32xf32>, vector<16x32xf32>, vector<16x32xf32>, vector<16x32xf32>, vector<16x32xf32>, vector<16x32xf32>, vector<16x32xf32>, vector<16x32xf32>, vector<16x32xf32>, vector<16x32xf32>, vector<16x32xf32>, vector<16x32xf32> -> vector<16x512xf32>
    %3 = vector.broadcast %0 : vector<1x512xf32> to vector<16x512xf32>
    %4 = arith.addf %3, %2 : vector<16x512xf32>
    %c0_3 = arith.constant 0 : index
    %c0_4 = arith.constant 0 : index
    %5 = vector.load %arg3[%c0_3, %c0_4] : memref<16x512xf32, #tpu.memory_space<vmem>>, vector<16x512xf32>
    tpu.vector_store %arg3[%c0_3, %c0_4], %4 {strides = array<i32>} : memref<16x512xf32, #tpu.memory_space<vmem>>, vector<16x512xf32>,
    return
  }
  func.func @transform_0(%arg0: i32) -> (i32, i32) {
    %c0_i32 = arith.constant 0 : i32
    %c0_i32_0 = arith.constant 0 : i32
    %c0_i32_1 = arith.constant 0 : i32
    return %c0_i32, %c0_i32_0 : i32, i32
  }
  func.func @transform_1(%arg0: i32) -> (i32, i32) {
    %c0_i32 = arith.constant 0 : i32
    %c0_i32_0 = arith.constant 0 : i32
    return %arg0, %c0_i32 : i32, i32
  }
  func.func @transform_2(%arg0: i32) -> (i32, i32) {
    %c0_i32 = arith.constant 0 : i32
    %c0_i32_0 = arith.constant 0 : i32
    return %arg0, %c0_i32 : i32, i32
  }
}

</mosaic_0001>

<llo_original>
// kernel: tpu_custom_call.1
$region0: #{tpu_custom_call.1}
  #allocation0 [shape = 'u32[]', space=smem, size = 0x4, offset = 0x4, fixed_abs, tag = 'smem constant byte address 0x4 - core index']
  #allocation1 [shape = 'u32[144,128]{1,0:T(1,128)}', space=vmem, size = 0x12000, scoped, tag = 'internal scratch']
  %s0 = inlined_call_operand.hbm [shape: f32[1,512], index: 0, kind: input, shape index: {}]
  %s1 = inlined_call_operand.hbm [shape: f32[16,32], index: 1, kind: input, shape index: {}]
  %s2 = inlined_call_operand.hbm [shape: f32[16,512], index: 2, kind: output, shape index: {}]
  %s3 = sld [smem:[#allocation0]]
  $region26: #{tpu_custom_call.1} parent=0
    _
  %s5 = ssub.s32 1, %s3
  %s6 = scalar_select 0, %s5, %s3
  $region1: #{tpu_custom_call.1} parent=0
    #allocation2 [shape = 'u8[2048]{0}', space=vmem, size = 0x800, scoped, tag = 'input window, operand 0, single buffered']
    #allocation3 [shape = 's32[1]{0}', space=sflag, size = 0x4, scoped, tag = 'scoped memory for tpu_custom_call.1']
    #allocation4 [shape = 's32[1]{0}', space=sflag, size = 0x4, scoped, tag = 'scoped memory for tpu_custom_call.1']
    #allocation5 [shape = 'u8[8192]{0}', space=vmem, size = 0x2000, scoped, tag = 'input window, operand 1, single buffered']
    #allocation6 [shape = 's32[1]{0}', space=sflag, size = 0x4, scoped, tag = 'scoped memory for tpu_custom_call.1']
    #allocation7 [shape = 'u8[32768]{0}', space=vmem, size = 0x8000, scoped, tag = 'output window, operand 0, single buffered']
    %7 = vsyncpa [#allocation3], 0
    %8 = vsyncpa [#allocation6], 0
    %9 = vsyncpa [#allocation4], 0
    // Predicated region
    $region2: #{tpu_custom_call.1} parent=1 // pred_check
      _
    $region3: #{tpu_custom_call.1} parent=1 // pred_check_branch
      %11 = sbr.rel (0) target = $region5
    $region4: #{tpu_custom_call.1} parent=1 // pred_region
      %s13 = ssub.s32 64, 64
      %14 = vsyncadd [#allocation3], %s13
      %s16 = sshll.u32 [#allocation2], 4
      %s17 = int_to_ptr.vmem [resolvable:$true] %s16
      %19 = dma.hbm_to_vmem [thread:$0]  %s0, 64, %s17, [#allocation3]
    $region5: #{tpu_custom_call.1} parent=1 // pred_fallthru
      _
    // Predicated region
    $region6: #{tpu_custom_call.1} parent=1 // pred_check
      _
    $region7: #{tpu_custom_call.1} parent=1 // pred_check_branch
      %21 = sbr.rel (0) target = $region9
    $region8: #{tpu_custom_call.1} parent=1 // pred_region
      %s23 = ssub.s32 256, 256
      %24 = vsyncadd [#allocation6], %s23
      %s25 = sshll.u32 [#allocation5], 4
      %s26 = int_to_ptr.vmem [resolvable:$true] %s25
      %31 = dma.hbm_to_vmem [thread:$0]  %s1, 256, %s26, [#allocation6], 128, 128, 8
    $region9: #{tpu_custom_call.1} parent=1 // pred_fallthru
      _
    // Predicated region
    $region10: #{tpu_custom_call.1} parent=1 // pred_check
      _
    $region11: #{tpu_custom_call.1} parent=1 // pred_check_branch
      %33 = sbr.rel (0) target = $region13
    $region12: #{tpu_custom_call.1} parent=1 // pred_region
      %34 = dma.done [#allocation3], 64
    $region13: #{tpu_custom_call.1} parent=1 // pred_fallthru
      _
    // Predicated region
    $region14: #{tpu_custom_call.1} parent=1 // pred_check
      _
    $region15: #{tpu_custom_call.1} parent=1 // pred_check_branch
      %36 = sbr.rel (0) target = $region17
    $region16: #{tpu_custom_call.1} parent=1 // pred_region
      %37 = dma.done [#allocation6], 256
    $region17: #{tpu_custom_call.1} parent=1 // pred_fallthru
      _
    %v38 = vld [vmem:[#allocation2] sm:$0xf]
    %v39 = vld [vmem:[#allocation5] sm:$0xff]
    %v40 = vld [vmem:[#allocation5 + $0x8] sm:$0xff]
    %43 = vrot.lane.b32.xlu0 %v39, 32
    %v44 = vpop.permute.xlu0 %43
    %45 = vrot.lane.b32.xlu0 %v40, 32
    %v46 = vpop.permute.xlu0 %45
    %49 = vrot.lane.b32.xlu0 %v39, 64
    %v50 = vpop.permute.xlu0 %49
    %51 = vrot.lane.b32.xlu0 %v40, 64
    %v52 = vpop.permute.xlu0 %51
    %55 = vrot.lane.b32.xlu0 %v39, 96
    %v56 = vpop.permute.xlu0 %55
    %57 = vrot.lane.b32.xlu0 %v40, 96
    %v58 = vpop.permute.xlu0 %57
    %vm61 = vcmask 261120
    %v62 = vsel %vm61, %v39, %v44
    %v63 = vsel %vm61, %v40, %v46
    %vm64 = vcmask 523264
    %v65 = vsel %vm64, %v62, %v50
    %v66 = vsel %vm64, %v63, %v52
    %vm67 = vcmask 785408
    %v68 = vsel %vm67, %v65, %v56
    %v69 = vsel %vm67, %v66, %v58
    %v71 = vlaneseq
    %v72 = vshrl.u32 %v71, 7
    %v73 = vsub.s32 0, %v72
    %v74 = vrot.slane %v38, %v73
    %v75 = vlaneseq
    %v76 = vshrl.u32 %v75, 7
    %v77 = vsub.s32 1, %v76
    %v78 = vrot.slane %v38, %v77
    %v79 = vlaneseq
    %v80 = vshrl.u32 %v79, 7
    %v81 = vsub.s32 2, %v80
    %v82 = vrot.slane %v38, %v81
    %v83 = vlaneseq
    %v84 = vshrl.u32 %v83, 7
    %v85 = vsub.s32 3, %v84
    %v86 = vrot.slane %v38, %v85
    %v91 = vadd.f32 %v74, %v68
    %v92 = vadd.f32 %v78, %v68
    %v93 = vadd.f32 %v82, %v68
    %v94 = vadd.f32 %v86, %v68
    %v95 = vadd.f32 %v74, %v69
    %v96 = vadd.f32 %v78, %v69
    %v97 = vadd.f32 %v82, %v69
    %v98 = vadd.f32 %v86, %v69
    %99 = vst [vmem:[#allocation7] sm:$0xff] %v91
    %100 = vst [vmem:[#allocation7 + $0x8] sm:$0xff] %v92
    %101 = vst [vmem:[#allocation7 + $0x10] sm:$0xff] %v93
    %102 = vst [vmem:[#allocation7 + $0x18] sm:$0xff] %v94
    %103 = vst [vmem:[#allocation7 + $0x20] sm:$0xff] %v95
    %104 = vst [vmem:[#allocation7 + $0x28] sm:$0xff] %v96
    %105 = vst [vmem:[#allocation7 + $0x30] sm:$0xff] %v97
    %106 = vst [vmem:[#allocation7 + $0x38] sm:$0xff] %v98
    // Predicated region
    $region18: #{tpu_custom_call.1} parent=1 // pred_check
      _
    $region19: #{tpu_custom_call.1} parent=1 // pred_check_branch
      %108 = sbr.rel (0) target = $region21
    $region20: #{tpu_custom_call.1} parent=1 // pred_region
      %s110 = ssub.s32 1024, 1024
      %111 = vsyncadd [#allocation4], %s110
      %s112 = sshll.u32 [#allocation7], 4
      %s113 = int_to_ptr.vmem [resolvable:$true] %s112
      %118 = dma.vmem_to_hbm [thread:$0]  %s113, 1024, %s2, [#allocation4], 512, 512, 32
    $region21: #{tpu_custom_call.1} parent=1 // pred_fallthru
      _
    // Predicated region
    $region22: #{tpu_custom_call.1} parent=1 // pred_check
      _
    $region23: #{tpu_custom_call.1} parent=1 // pred_check_branch
      %120 = sbr.rel (0) target = $region25
    $region24: #{tpu_custom_call.1} parent=1 // pred_region
      %121 = dma.done [#allocation4], 1024
    $region25: #{tpu_custom_call.1} parent=1 // pred_fallthru
      _
    %122 = vsyncpa [#allocation3], 1
    %123 = vsyncpa [#allocation6], 1
    %124 = vsyncpa [#allocation4], 1

</llo_original>
